<compile_context>
chip_gen: v7x
topology: tpu7x:2x2x1
jax: 0.10.0
libtpu: 0.0.40
codegen_flags: <defaults>
</compile_context>

<pallas_src>
import math
import functools

import jax
import jax.numpy as jnp
from jax.experimental import pallas as pl
from jax.experimental.pallas import tpu as pltpu

_SQRT2 = math.sqrt(2.0)
_LANE = 128
_MXU_N = 256   # v6e/v7x MXUs are 2x256x256 -> pad tiny model dims up to 256


def _round_up(n, m):
    return ((n + m - 1) // m) * m


def _cdiv(a, b):
    return (a + b - 1) // b


# ---------------------------------------------------------------------------
# Optional pipeline_mode support (single-buffer blocks whose index never
# changes along the reduction axis). Degrades gracefully if unavailable.
# ---------------------------------------------------------------------------
def _probe_pipeline_mode():
    if not hasattr(pl, "Buffered"):
        return False
    try:
        pl.BlockSpec((8, _LANE), lambda i: (i, 0), pipeline_mode=pl.Buffered(1))
        return True
    except Exception:
        return False


_HAS_PIPELINE_MODE = _probe_pipeline_mode()


def _spec(block_shape, index_map, *, buffers=None):
    if buffers is not None and _HAS_PIPELINE_MODE:
        return pl.BlockSpec(block_shape, index_map, pipeline_mode=pl.Buffered(buffers))
    return pl.BlockSpec(block_shape, index_map)


def _device_vmem_bytes():
    """Physical per-core VMEM (128 MiB on v5e/v6e, 64 MiB on v7x)."""
    try:
        return int(pltpu.get_tpu_info().vmem_capacity_bytes)
    except Exception:
        return 64 * 1024 * 1024   # conservative (v7x) fallback


# ---------------------------------------------------------------------------
# Kernel
# ---------------------------------------------------------------------------
def _mlp_kernel(x_ref, wu_ref, bu_ref, wd_ref, bd_ref, o_ref, acc_ref, *, act_name):
    # x_ref:  (tm, Dp)      token tile (already in compute dtype; cast hoisted)
    # wu_ref: (1, Dp, hc)   contiguous up-projection weight chunk
    # bu_ref: (1, hc)       up-projection bias chunk (f32)
    # wd_ref: (hc, Dp)      down-projection weight chunk
    # bd_ref: (1, Dp)       down-projection bias (f32)
    # o_ref:  (tm, Dp)      output tile
    # acc_ref:(tm, Dp)      f32 accumulator, carried across the hidden-chunk axis
    k = pl.program_id(1)

    @pl.when(k == 0)
    def _():
        acc_ref[...] = jnp.zeros_like(acc_ref)

    # Up-projection chunk (MXU, f32 accumulation) + bias; activation in f32.
    h = jnp.dot(x_ref[...], wu_ref[0], preferred_element_type=jnp.float32)
    h = h + bu_ref[...]

    if act_name == "gelu":            # exact erf GELU (torch.nn.GELU default)
        h = 0.5 * h * (1.0 + jax.lax.erf(h * (1.0 / _SQRT2)))
    elif act_name == "gelu_tanh":     # tanh approximation -> runs on the EUP slot
        h = jax.nn.gelu(h, approximate=True)
    elif act_name == "relu":
        h = jnp.maximum(h, 0.0)
    elif act_name == "lrelu":
        h = jnp.where(h >= 0.0, h, 0.01 * h)   # torch LeakyReLU default slope
    else:
        raise ValueError(f"Activation '{act_name}' is not implemented.")

    # hidden dropout: identity (eval mode)

    # Down-projection partial sum (MXU) into the f32 accumulator.
    acc_ref[...] += jnp.dot(h.astype(wd_ref.dtype), wd_ref[...],
                            preferred_element_type=jnp.float32)

    @pl.when(k == pl.num_programs(1) - 1)
    def _():
        # out dropout: identity (eval mode)
        o_ref[...] = (acc_ref[...] + bd_ref[...]).astype(o_ref.dtype)


# ---------------------------------------------------------------------------
# One-time weight prep (do this OUTSIDE the per-call forward)
# ---------------------------------------------------------------------------
def prepare_mlp_params(w_up, b_up, w_down, b_down, *,
                       compute_dtype=jnp.bfloat16, hidden_chunk=512):
    """Transpose torch-layout weights, cast to compute_dtype (bf16 for MXU peak,
    biases stay f32), pad D to a lane/MXU-friendly width (>=256) and pad H so it
    splits into nk equal contiguous chunks of width hc ~= hidden_chunk.
    W_up is stored pre-chunked as (nk, Dp, hc) so each k-step weight DMA is one
    contiguous HBM block."""
    H, D = w_up.shape
    assert w_down.shape == (D, H)
    assert hidden_chunk % _LANE == 0

    Dp = max(_round_up(D, _LANE), _MXU_N)
    H128 = _round_up(H, _LANE)
    nk = _cdiv(H128, hidden_chunk)
    hc = _round_up(_cdiv(H128, nk), _LANE)   # chunk width, no gcd collapse
    Hp = nk * hc

    wu_full = jnp.zeros((Dp, Hp), compute_dtype)
    wu_full = wu_full.at[:D, :H].set(w_up.T.astype(compute_dtype))
    wu_chunks = wu_full.reshape(Dp, nk, hc).transpose(1, 0, 2)   # (nk, Dp, hc)

    wd_t = jnp.zeros((Hp, Dp), compute_dtype)
    wd_t = wd_t.at[:H, :D].set(w_down.T.astype(compute_dtype))

    bu = jnp.zeros((1, Hp), jnp.float32).at[0, :H].set(b_up.astype(jnp.float32))
    bd = jnp.zeros((1, Dp), jnp.float32).at[0, :D].set(b_down.astype(jnp.float32))
    return wu_chunks, bu, wd_t, bd


# ---------------------------------------------------------------------------
# Forward
# ---------------------------------------------------------------------------
@functools.partial(jax.jit, static_argnames=("act_name", "tm"))
def mlp_forward(x, wu_chunks, bu, wd_t, bd, *, act_name="gelu", tm=512):
    """x: (..., D). Prepared params from prepare_mlp_params.

    tm: token tile target (512 keeps v6e/v7x MXU-bound; auto-shrunk if the tile
        footprint would exceed device VMEM). If x is f32 and the prepared
        weights are bf16, x is cast to bf16 for the MXU matmuls (f32 accum).
    """
    assert tm % 8 == 0
    orig_shape = x.shape
    D = orig_shape[-1]
    nk, Dp, hc = wu_chunks.shape
    Hp = nk * hc
    assert D <= Dp and wd_t.shape == (Hp, Dp)
    assert bu.shape == (1, Hp) and bd.shape == (1, Dp)

    out_dtype = x.dtype
    compute_dtype = wu_chunks.dtype

    M = 1
    for s in orig_shape[:-1]:
        M *= s
    # Hoisted precision cast (no per-k VALU cast inside the kernel).
    x2 = x.reshape(M, D).astype(compute_dtype)
    if Dp != D:
        x2 = jnp.pad(x2, ((0, 0), (0, Dp - D)))

    # --- token-tile selection: spread rows over blocks to minimize padding ---
    if M <= tm:
        tm_eff = _round_up(max(M, 8), 8)
    else:
        nb0 = _cdiv(M, tm)
        tm_eff = _round_up(_cdiv(M, nb0), _LANE)   # multiple of 128 for the MXU

    cb = jnp.dtype(compute_dtype).itemsize
    ob = jnp.dtype(out_dtype).itemsize
    n_single = 1 if _HAS_PIPELINE_MODE else 2

    def footprint(tm_):
        return (n_single * tm_ * Dp * cb       # x tile (single-buffered if possible)
                + 2 * Dp * hc * cb              # W_up chunks (double-buffered)
                + 2 * hc * 4                    # b_up chunks
                + 2 * hc * Dp * cb              # W_down chunks
                + n_single * Dp * 4             # b_down
                + 2 * tm_ * Dp * ob             # output tiles
                + tm_ * Dp * 4)                 # f32 accumulator

    vmem_cap = _device_vmem_bytes() - 6 * 1024 * 1024   # never above physical VMEM
    while tm_eff > _LANE and int(footprint(tm_eff) * 1.15) > vmem_cap:
        tm_eff = max(_LANE, _round_up(tm_eff // 2, 8))

    nb = _cdiv(M, tm_eff)
    Mp = nb * tm_eff
    if Mp != M:
        x2 = jnp.pad(x2, ((0, Mp - M), (0, 0)))

    vmem_limit = int(min(vmem_cap,
                         max(32 * 1024 * 1024,
                             int(footprint(tm_eff) * 1.3) + (2 << 20))))

    kernel = functools.partial(_mlp_kernel, act_name=act_name)

    out2 = pl.pallas_call(
        kernel,
        out_shape=jax.ShapeDtypeStruct((Mp, Dp), out_dtype),
        grid_spec=pltpu.PrefetchScalarGridSpec(
            num_scalar_prefetch=0,
            grid=(nb, nk),
            in_specs=[
                _spec((tm_eff, Dp), lambda i, k: (i, 0), buffers=1),  # x tile
                _spec((1, Dp, hc), lambda i, k: (k, 0, 0)),           # W_up^T chunk
                _spec((1, hc), lambda i, k: (0, k)),                  # b_up chunk
                _spec((hc, Dp), lambda i, k: (k, 0)),                 # W_down^T chunk
                _spec((1, Dp), lambda i, k: (0, 0), buffers=1),       # b_down
            ],
            out_specs=pl.BlockSpec((tm_eff, Dp), lambda i, k: (i, 0)),
            scratch_shapes=[pltpu.VMEM((tm_eff, Dp), jnp.float32)],
        ),
        compiler_params=pltpu.CompilerParams(
            dimension_semantics=("parallel", "arbitrary"),
            vmem_limit_bytes=vmem_limit,
        ),
    )(x2, wu_chunks, bu, wd_t, bd)

    out2 = out2[:M, :D]
    return out2.reshape(orig_shape)


# ---------------------------------------------------------------------------
# Init / reference / self-test
# ---------------------------------------------------------------------------
def init_mlp_params(key, model_dim, dtype=jnp.float32):
    """Deterministic init matching nn.Linear's uniform(-1/sqrt(fan_in), ...)."""
    hidden = 4 * model_dim
    k1, k2, k3, k4 = jax.random.split(key, 4)
    bound_up = 1.0 / math.sqrt(model_dim)
    bound_dn = 1.0 / math.sqrt(hidden)
    w_up = jax.random.uniform(k1, (hidden, model_dim), dtype, -bound_up, bound_up)
    b_up = jax.random.uniform(k2, (hidden,), dtype, -bound_up, bound_up)
    w_down = jax.random.uniform(k3, (model_dim, hidden), dtype, -bound_dn, bound_dn)
    b_down = jax.random.uniform(k4, (model_dim,), dtype, -bound_dn, bound_dn)
    return w_up, b_up, w_down, b_down


def _ref_mlp(x, w_up, b_up, w_down, b_down):
    h = x @ w_up.T + b_up
    h = 0.5 * h * (1.0 + jax.lax.erf(h / _SQRT2))
    return h @ w_down.T + b_down


if __name__ == "__main__":
    key = jax.random.PRNGKey(0)
    B, T, D = 2, 8, 32            # batch=2, seq=8, model_dim=32 -> hidden=128

    k_x, k_p, k_x2, k_p2 = jax.random.split(key, 4)
    x = jax.random.normal(k_x, (B, T, D), jnp.float32)
    w_up, b_up, w_down, b_down = init_mlp_params(k_p, D)
    ref = _ref_mlp(x, w_up, b_up, w_down, b_down)

    # --- f32 compute path: comparable to the pure-JAX reference. ---
    params_f32 = prepare_mlp_params(w_up, b_up, w_down, b_down,
                                    compute_dtype=jnp.float32)
    out = jax.block_until_ready(mlp_forward(x, *params_f32, act_name="gelu"))
    assert out.shape == (B, T, D)
    assert jnp.allclose(out, ref, atol=1e-5, rtol=1e-5)

    # --- bf16 MXU path (production config): f32 accumulation, loose tolerance. ---
    params_bf16 = prepare_mlp_params(w_up, b_up, w_down, b_down,
                                     compute_dtype=jnp.bfloat16)
    out_bf16 = jax.block_until_ready(
        mlp_forward(x.astype(jnp.bfloat16), *params_bf16, act_name="gelu"))
    assert out_bf16.shape == (B, T, D)
    assert jnp.allclose(out_bf16.astype(jnp.float32), ref, atol=5e-2, rtol=5e-2)

    # --- multi-chunk grid (nk > 1), non-lane-aligned D, ragged token count. ---
    D2 = 192                       # hidden = 768 -> 2 contiguous chunks of 384
    x_b = jax.random.normal(k_x2, (3, 50, D2), jnp.float32)
    p2 = init_mlp_params(k_p2, D2)
    ref2 = _ref_mlp(x_b, *p2)
    params2 = prepare_mlp_params(*p2, compute_dtype=jnp.float32)
    out2 = jax.block_until_ready(mlp_forward(x_b, *params2, act_name="gelu"))
    assert out2.shape == x_b.shape
    assert jnp.allclose(out2, ref2, atol=1e-4, rtol=1e-4)

    print("KERNEL_OK")
</pallas_src>

<mosaic_0001>
module attributes {stable_mosaic.version = 11 : i64} {
  func.func @_mlp_kernel(%arg0: i32, %arg1: i32, %arg2: memref<16x256xf32, #tpu.memory_space<vmem>>, %arg3: memref<1x256x128xf32, #tpu.memory_space<vmem>>, %arg4: memref<1x128xf32, #tpu.memory_space<vmem>>, %arg5: memref<128x256xf32, #tpu.memory_space<vmem>>, %arg6: memref<1x256xf32, #tpu.memory_space<vmem>>, %arg7: memref<16x256xf32, #tpu.memory_space<vmem>>, %arg8: memref<16x256xf32, #tpu.memory_space<vmem>>) attributes {dimension_semantics = [#tpu.dimension_semantics<parallel>, #tpu.dimension_semantics<arbitrary>], iteration_bounds = array<i64: 1, 1>, scalar_prefetch = 0 : i64, scratch_operands = 1 : i64, tpu.core_type = #tpu.core_type<tc>, window_params = [{pipeline_mode = #tpu.pipeline_mode<synchronous>, transform_indices = @transform_0, window_bounds = array<i64: 16, 256>}, {transform_indices = @transform_1, window_bounds = array<i64: 1, 256, 128>}, {transform_indices = @transform_2, window_bounds = array<i64: 1, 128>}, {transform_indices = @transform_3, window_bounds = array<i64: 128, 256>}, {pipeline_mode = #tpu.pipeline_mode<synchronous>, transform_indices = @transform_4, window_bounds = array<i64: 1, 256>}, {transform_indices = @transform_5, window_bounds = array<i64: 16, 256>}]} {
    %c0_i32 = arith.constant 0 : i32
    %0 = arith.cmpi eq, %arg1, %c0_i32 : i32
    %1 = arith.extui %0 : i1 to i32
    %c0_i32_0 = arith.constant 0 : i32
    %2 = arith.cmpi ne, %1, %c0_i32_0 : i32
    scf.if %2 {
      %cst_19 = arith.constant 0.000000e+00 : f32
      %26 = vector.broadcast %cst_19 : f32 to vector<16x256xf32>
      %c0_20 = arith.constant 0 : index
      %c0_21 = arith.constant 0 : index
      %27 = vector.load %arg8[%c0_20, %c0_21] : memref<16x256xf32, #tpu.memory_space<vmem>>, vector<16x256xf32>
      tpu.vector_store %arg8[%c0_20, %c0_21], %26 {strides = array<i32>} : memref<16x256xf32, #tpu.memory_space<vmem>>, vector<16x256xf32>,
    } else {
    }
    %c0 = arith.constant 0 : index
    %c0_1 = arith.constant 0 : index
    %3 = vector.load %arg2[%c0, %c0_1] : memref<16x256xf32, #tpu.memory_space<vmem>>, vector<16x256xf32>
    %c0_2 = arith.constant 0 : index
    %c0_3 = arith.constant 0 : index
    %c0_4 = arith.constant 0 : index
    %4 = vector.load %arg3[%c0_2, %c0_3, %c0_4] : memref<1x256x128xf32, #tpu.memory_space<vmem>>, vector<1x256x128xf32>
    %5 = vector.shape_cast %4 : vector<1x256x128xf32> to vector<256x128xf32>
    %cst = arith.constant dense<0.000000e+00> : vector<16x128xf32>
    %6 = tpu.matmul %3, %5, %cst {dimension_numbers = #tpu.dot_dimension_numbers<[1], [0], [0], [1], [0, 0, 1, 1], [], []>} : vector<16x256xf32>, vector<256x128xf32>, vector<16x128xf32> -> vector<16x128xf32>
    %c0_5 = arith.constant 0 : index
    %c0_6 = arith.constant 0 : index
    %7 = vector.load %arg4[%c0_5, %c0_6] : memref<1x128xf32, #tpu.memory_space<vmem>>, vector<1x128xf32>
    %8 = vector.broadcast %7 : vector<1x128xf32> to vector<16x128xf32>
    %9 = arith.addf %6, %8 : vector<16x128xf32>
    %cst_7 = arith.constant 5.000000e-01 : f32
    %10 = vector.broadcast %cst_7 : f32 to vector<16x128xf32>
    %11 = arith.mulf %10, %9 : vector<16x128xf32>
    %cst_8 = arith.constant 0.707106769 : f32
    %12 = vector.broadcast %cst_8 : f32 to vector<16x128xf32>
    %13 = arith.mulf %9, %12 : vector<16x128xf32>
    %14 = math.erf %13 : vector<16x128xf32>
    %cst_9 = arith.constant 1.000000e+00 : f32
    %15 = vector.broadcast %cst_9 : f32 to vector<16x128xf32>
    %16 = arith.addf %15, %14 : vector<16x128xf32>
    %17 = arith.mulf %11, %16 : vector<16x128xf32>
    %c0_10 = arith.constant 0 : index
    %c0_11 = arith.constant 0 : index
    %18 = vector.load %arg8[%c0_10, %c0_11] : memref<16x256xf32, #tpu.memory_space<vmem>>, vector<16x256xf32>
    %c0_12 = arith.constant 0 : index
    %c0_13 = arith.constant 0 : index
    %19 = vector.load %arg5[%c0_12, %c0_13] : memref<128x256xf32, #tpu.memory_space<vmem>>, vector<128x256xf32>
    %cst_14 = arith.constant dense<0.000000e+00> : vector<16x256xf32>
    %20 = tpu.matmul %17, %19, %cst_14 {dimension_numbers = #tpu.dot_dimension_numbers<[1], [0], [0], [1], [0, 0, 1, 1], [], []>} : vector<16x128xf32>, vector<128x256xf32>, vector<16x256xf32> -> vector<16x256xf32>
    %21 = arith.addf %18, %20 : vector<16x256xf32>
    %c0_15 = arith.constant 0 : index
    %c0_16 = arith.constant 0 : index
    %22 = vector.load %arg8[%c0_15, %c0_16] : memref<16x256xf32, #tpu.memory_space<vmem>>, vector<16x256xf32>
    tpu.vector_store %arg8[%c0_15, %c0_16], %21 {strides = array<i32>} : memref<16x256xf32, #tpu.memory_space<vmem>>, vector<16x256xf32>,
    %c0_i32_17 = arith.constant 0 : i32
    %23 = arith.cmpi eq, %arg1, %c0_i32_17 : i32
    %24 = arith.extui %23 : i1 to i32
    %c0_i32_18 = arith.constant 0 : i32
    %25 = arith.cmpi ne, %24, %c0_i32_18 : i32
    scf.if %25 {
      %c0_19 = arith.constant 0 : index
      %c0_20 = arith.constant 0 : index
      %26 = vector.load %arg8[%c0_19, %c0_20] : memref<16x256xf32, #tpu.memory_space<vmem>>, vector<16x256xf32>
      %c0_21 = arith.constant 0 : index
      %c0_22 = arith.constant 0 : index
      %27 = vector.load %arg6[%c0_21, %c0_22] : memref<1x256xf32, #tpu.memory_space<vmem>>, vector<1x256xf32>
      %28 = vector.broadcast %27 : vector<1x256xf32> to vector<16x256xf32>
      %29 = arith.addf %26, %28 : vector<16x256xf32>
      %c0_23 = arith.constant 0 : index
      %c0_24 = arith.constant 0 : index
      %30 = vector.load %arg7[%c0_23, %c0_24] : memref<16x256xf32, #tpu.memory_space<vmem>>, vector<16x256xf32>
      tpu.vector_store %arg7[%c0_23, %c0_24], %29 {strides = array<i32>} : memref<16x256xf32, #tpu.memory_space<vmem>>, vector<16x256xf32>,
    } else {
    }
    return
  }
  func.func @transform_0(%arg0: i32, %arg1: i32) -> (i32, i32) {
    %c0_i32 = arith.constant 0 : i32
    %c0_i32_0 = arith.constant 0 : i32
    return %arg0, %c0_i32 : i32, i32
  }
  func.func @transform_1(%arg0: i32, %arg1: i32) -> (i32, i32, i32) {
    %c0_i32 = arith.constant 0 : i32
    %c0_i32_0 = arith.constant 0 : i32
    %c0_i32_1 = arith.constant 0 : i32
    return %arg1, %c0_i32, %c0_i32_0 : i32, i32, i32
  }
  func.func @transform_2(%arg0: i32, %arg1: i32) -> (i32, i32) {
    %c0_i32 = arith.constant 0 : i32
    %c0_i32_0 = arith.constant 0 : i32
    return %c0_i32, %arg1 : i32, i32
  }
  func.func @transform_3(%arg0: i32, %arg1: i32) -> (i32, i32) {
    %c0_i32 = arith.constant 0 : i32
    %c0_i32_0 = arith.constant 0 : i32
    return %arg1, %c0_i32 : i32, i32
  }
  func.func @transform_4(%arg0: i32, %arg1: i32) -> (i32, i32) {
    %c0_i32 = arith.constant 0 : i32
    %c0_i32_0 = arith.constant 0 : i32
    %c0_i32_1 = arith.constant 0 : i32
    return %c0_i32, %c0_i32_0 : i32, i32
  }
  func.func @transform_5(%arg0: i32, %arg1: i32) -> (i32, i32) {
    %c0_i32 = arith.constant 0 : i32
    %c0_i32_0 = arith.constant 0 : i32
    return %arg0, %c0_i32 : i32, i32
  }
}

</mosaic_0001>

<llo_original>
// kernel: mlp_forward.1
$region0: #{mlp_forward.1}
  #allocation0 [shape = 'u32[]', space=smem, size = 0x4, offset = 0x4, fixed_abs, tag = 'smem constant byte address 0x4 - core index']
  #allocation1 [shape = 'u32[144,128]{1,0:T(1,128)}', space=vmem, size = 0x12000, scoped, tag = 'internal scratch']
  #allocation2 [shape = 'f32[16,256]{1,0:T(8,128)}', space=vmem, size = 0x4000, scoped, tag = 'scratch operand']
  %s0 = inlined_call_operand.vmem [shape: f32[16,256], index: 0, kind: input, shape index: {}]
  %s1 = inlined_call_operand.hbm [shape: f32[1,256,128], index: 1, kind: input, shape index: {}]
  %s2 = inlined_call_operand.vmem [shape: f32[1,128], index: 2, kind: input, shape index: {}]
  %s3 = inlined_call_operand.hbm [shape: f32[128,256], index: 3, kind: input, shape index: {}]
  %s4 = inlined_call_operand.vmem [shape: f32[1,256], index: 4, kind: input, shape index: {}]
  %s5 = inlined_call_operand.vmem [shape: f32[16,256], index: 5, kind: output, shape index: {}]
  %s6 = sld [smem:[#allocation0]]
  $region46: #{mlp_forward.1} parent=0
    _
  %s8 = ssub.s32 1, %s6
  %s9 = scalar_select 0, %s8, %s6
  $region1: #{mlp_forward.1} parent=0
    #allocation3 [shape = 'u8[131072]{0}', space=vmem, size = 0x20000, scoped, tag = 'input window, operand 1, single buffered']
    #allocation4 [shape = 's32[1]{0}', space=sflag, size = 0x4, scoped, tag = 'scoped memory for mlp_forward.1']
    #allocation5 [shape = 'u8[131072]{0}', space=vmem, size = 0x20000, scoped, tag = 'input window, operand 3, single buffered']
    #allocation6 [shape = 's32[1]{0}', space=sflag, size = 0x4, scoped, tag = 'scoped memory for mlp_forward.1']
    %10 = vsyncpa [#allocation4], 0
    %11 = vsyncpa [#allocation6], 0
    // Predicated region
    $region2: #{mlp_forward.1} parent=1 // pred_check
      _
    $region3: #{mlp_forward.1} parent=1 // pred_check_branch
      %13 = sbr.rel (0) target = $region5
    $region4: #{mlp_forward.1} parent=1 // pred_region
      _
    $region5: #{mlp_forward.1} parent=1 // pred_fallthru
      _
    // Predicated region
    $region6: #{mlp_forward.1} parent=1 // pred_check
      _
    $region7: #{mlp_forward.1} parent=1 // pred_check_branch
      %15 = sbr.rel (0) target = $region9
    $region8: #{mlp_forward.1} parent=1 // pred_region
      %s17 = ssub.s32 4096, 4096
      %18 = vsyncadd [#allocation4], %s17
      %s19 = sshll.u32 [#allocation3], 4
      %s20 = int_to_ptr.vmem [resolvable:$true] %s19
      %25 = dma.hbm_to_vmem [thread:$0]  %s1, 4096, %s20, [#allocation4], 128, 128, 8
    $region9: #{mlp_forward.1} parent=1 // pred_fallthru
      _
    // Predicated region
    $region10: #{mlp_forward.1} parent=1 // pred_check
      _
    $region11: #{mlp_forward.1} parent=1 // pred_check_branch
      %27 = sbr.rel (0) target = $region13
    $region12: #{mlp_forward.1} parent=1 // pred_region
      _
    $region13: #{mlp_forward.1} parent=1 // pred_fallthru
      _
    // Predicated region
    $region14: #{mlp_forward.1} parent=1 // pred_check
      _
    $region15: #{mlp_forward.1} parent=1 // pred_check_branch
      %29 = sbr.rel (0) target = $region17
    $region16: #{mlp_forward.1} parent=1 // pred_region
      %s31 = ssub.s32 4096, 4096
      %32 = vsyncadd [#allocation6], %s31
      %s33 = sshll.u32 [#allocation5], 4
      %s34 = int_to_ptr.vmem [resolvable:$true] %s33
      %39 = dma.hbm_to_vmem [thread:$0]  %s3, 4096, %s34, [#allocation6], 256, 256, 16
    $region17: #{mlp_forward.1} parent=1 // pred_fallthru
      _
    // Predicated region
    $region18: #{mlp_forward.1} parent=1 // pred_check
      _
    $region19: #{mlp_forward.1} parent=1 // pred_check_branch
      %41 = sbr.rel (0) target = $region21
    $region20: #{mlp_forward.1} parent=1 // pred_region
      _
    $region21: #{mlp_forward.1} parent=1 // pred_fallthru
      _
    // Predicated region
    $region22: #{mlp_forward.1} parent=1 // pred_check
      _
    $region23: #{mlp_forward.1} parent=1 // pred_check_branch
      %43 = sbr.rel (0) target = $region25
    $region24: #{mlp_forward.1} parent=1 // pred_region
      %44 = dma.done [#allocation4], 4096
    $region25: #{mlp_forward.1} parent=1 // pred_fallthru
      _
    // Predicated region
    $region26: #{mlp_forward.1} parent=1 // pred_check
      _
    $region27: #{mlp_forward.1} parent=1 // pred_check_branch
      %46 = sbr.rel (0) target = $region29
    $region28: #{mlp_forward.1} parent=1 // pred_region
      %47 = dma.done [#allocation6], 4096
    $region29: #{mlp_forward.1} parent=1 // pred_fallthru
      _
    %p48 = scmp.eq.s32.totalorder 0, 0
    // Predicated region
    $region30: #{mlp_forward.1} parent=1 // pred_check
      %p49 = pneg %p48
    $region31: #{mlp_forward.1} parent=1 // pred_check_branch
      %51 = sbr.rel (%p49) target = $region33
    $region32: #{mlp_forward.1} parent=1 // pred_region
      %52 = vst [vmem:[#allocation2] sm:$0xff] 0.0
      %53 = vst [vmem:[#allocation2 + $0x8] sm:$0xff] 0.0
      %54 = vst [vmem:[#allocation2 + $0x10] sm:$0xff] 0.0
      %55 = vst [vmem:[#allocation2 + $0x18] sm:$0xff] 0.0
    $region33: #{mlp_forward.1} parent=1 // pred_fallthru
      _
    %v56 = vld [vmem:[%s0] sm:$0xff]
    %v57 = vld [vmem:[%s0 + $0x8] sm:$0xff]
    %v58 = vld [vmem:[%s0 + $0x10] sm:$0xff]
    %v59 = vld [vmem:[%s0 + $0x18] sm:$0xff]
    %v60 = vld [vmem:[#allocation3] sm:$0xff]
    %v61 = vld [vmem:[#allocation3 + $0x8] sm:$0xff]
    %v62 = vld [vmem:[#allocation3 + $0x10] sm:$0xff]
    %v63 = vld [vmem:[#allocation3 + $0x18] sm:$0xff]
    %v64 = vld [vmem:[#allocation3 + $0x20] sm:$0xff]
    %v65 = vld [vmem:[#allocation3 + $0x28] sm:$0xff]
    %v66 = vld [vmem:[#allocation3 + $0x30] sm:$0xff]
    %v67 = vld [vmem:[#allocation3 + $0x38] sm:$0xff]
    %v68 = vld [vmem:[#allocation3 + $0x40] sm:$0xff]
    %v69 = vld [vmem:[#allocation3 + $0x48] sm:$0xff]
    %v70 = vld [vmem:[#allocation3 + $0x50] sm:$0xff]
    %v71 = vld [vmem:[#allocation3 + $0x58] sm:$0xff]
    %v72 = vld [vmem:[#allocation3 + $0x60] sm:$0xff]
    %v73 = vld [vmem:[#allocation3 + $0x68] sm:$0xff]
    %v74 = vld [vmem:[#allocation3 + $0x70] sm:$0xff]
    %v75 = vld [vmem:[#allocation3 + $0x78] sm:$0xff]
    %v76 = vld [vmem:[#allocation3 + $0x80] sm:$0xff]
    %v77 = vld [vmem:[#allocation3 + $0x88] sm:$0xff]
    %v78 = vld [vmem:[#allocation3 + $0x90] sm:$0xff]
    %v79 = vld [vmem:[#allocation3 + $0x98] sm:$0xff]
    %v80 = vld [vmem:[#allocation3 + $0xa0] sm:$0xff]
    %v81 = vld [vmem:[#allocation3 + $0xa8] sm:$0xff]
    %v82 = vld [vmem:[#allocation3 + $0xb0] sm:$0xff]
    %v83 = vld [vmem:[#allocation3 + $0xb8] sm:$0xff]
    %v84 = vld [vmem:[#allocation3 + $0xc0] sm:$0xff]
    %v85 = vld [vmem:[#allocation3 + $0xc8] sm:$0xff]
    %v86 = vld [vmem:[#allocation3 + $0xd0] sm:$0xff]
    %v87 = vld [vmem:[#allocation3 + $0xd8] sm:$0xff]
    %v88 = vld [vmem:[#allocation3 + $0xe0] sm:$0xff]
    %v89 = vld [vmem:[#allocation3 + $0xe8] sm:$0xff]
    %v90 = vld [vmem:[#allocation3 + $0xf0] sm:$0xff]
    %v91 = vld [vmem:[#allocation3 + $0xf8] sm:$0xff]
    %v92 = vld [vmem:[%s2] sm:$0x1]
    %v94 = vlaneseq
    %v95 = vshrl.u32 %v94, 7
    %v96 = vsub.s32 0, %v95
    %v97 = vrot.slane %v92, %v96
    %99 = vmatprep.subr.mxu0 0.0
    %100 = vmatpush1.msra.mxu0 %v60
    %101 = vmatprep.subr.mxu0 0.0
    %102 = vmatpush1.msra.mxu0 %v61
    %103 = vmatprep.subr.mxu0 0.0
    %104 = vmatpush1.msra.mxu0 %v62
    %105 = vmatprep.subr.mxu0 0.0
    %106 = vmatpush1.msra.mxu0 %v63
    %107 = vmatprep.subr.mxu0 0.0
    %108 = vmatpush1.msra.mxu0 %v64
    %109 = vmatprep.subr.mxu0 0.0
    %110 = vmatpush1.msra.mxu0 %v65
    %111 = vmatprep.subr.mxu0 0.0
    %112 = vmatpush1.msra.mxu0 %v66
    %113 = vmatprep.subr.mxu0 0.0
    %114 = vmatpush1.msra.mxu0 %v67
    %115 = vmatprep.subr.mxu0 0.0
    %116 = vmatpush1.msra.mxu0 %v68
    %117 = vmatprep.subr.mxu0 0.0
    %118 = vmatpush1.msra.mxu0 %v69
    %119 = vmatprep.subr.mxu0 0.0
    %120 = vmatpush1.msra.mxu0 %v70
    %121 = vmatprep.subr.mxu0 0.0
    %122 = vmatpush1.msra.mxu0 %v71
    %123 = vmatprep.subr.mxu0 0.0
    %124 = vmatpush1.msra.mxu0 %v72
    %125 = vmatprep.subr.mxu0 0.0
    %126 = vmatpush1.msra.mxu0 %v73
    %127 = vmatprep.subr.mxu0 0.0
    %128 = vmatpush1.msra.mxu0 %v74
    %129 = vmatprep.subr.mxu0 0.0
    %130 = vmatpush1.msra.mxu0 %v75
    %131 = vmatprep.subr.mxu0 0.0
    %132 = vmatpush1.msra.mxu0 %v76
    %133 = vmatprep.subr.mxu0 0.0
    %134 = vmatpush1.msra.mxu0 %v77
    %135 = vmatprep.subr.mxu0 0.0
    %136 = vmatpush1.msra.mxu0 %v78
    %137 = vmatprep.subr.mxu0 0.0
    %138 = vmatpush1.msra.mxu0 %v79
    %139 = vmatprep.subr.mxu0 0.0
    %140 = vmatpush1.msra.mxu0 %v80
    %141 = vmatprep.subr.mxu0 0.0
    %142 = vmatpush1.msra.mxu0 %v81
    %143 = vmatprep.subr.mxu0 0.0
    %144 = vmatpush1.msra.mxu0 %v82
    %145 = vmatprep.subr.mxu0 0.0
    %146 = vmatpush1.msra.mxu0 %v83
    %147 = vmatprep.subr.mxu0 0.0
    %148 = vmatpush1.msra.mxu0 %v84
    %149 = vmatprep.subr.mxu0 0.0
    %150 = vmatpush1.msra.mxu0 %v85
    %151 = vmatprep.subr.mxu0 0.0
    %152 = vmatpush1.msra.mxu0 %v86
    %153 = vmatprep.subr.mxu0 0.0
    %154 = vmatpush1.msra.mxu0 %v87
    %155 = vmatprep.subr.mxu0 0.0
    %156 = vmatpush1.msra.mxu0 %v88
    %157 = vmatprep.subr.mxu0 0.0
    %158 = vmatpush1.msra.mxu0 %v89
    %159 = vmatprep.subr.mxu0 0.0
    %160 = vmatpush1.msra.mxu0 %v90
    %161 = vmatprep.subr.mxu0 0.0
    %162 = vmatpush1.msra.mxu0 %v91
    %163 = vmatprep.mubr.f32.mxu0 %v57
    %164 = vmatmul.mubr.f32.gmra.mrb[0].mxu0 %v56
    %v165 = vpop.f32.mrb[0].mxu0
    %v166 = vadd.f32 %v97, %v165
    %v167 = vpop.f32.mrb[0].mxu0
    %168 = vmatprep.mubr.f32.mxu0 %v59
    %169 = vmatmul.mubr.f32.gmra.mrb[0].mxu0 %v58
    %v170 = vpop.f32.mrb[0].mxu0
    %v171 = vadd.f32 %v97, %v170
    %v172 = vpop.f32.mrb[0].mxu0
    %173 = vdwg.mxu0
    %v174 = vmul.f32 %v166, 0.5
    %v175 = vmul.f32 %v171, 0.5
    %v176 = vmul.f32 %v166, 0.70710677
    %v177 = vmul.f32 %v171, 0.70710677
    %v178 = verf.f32.pop %v176
    %v179 = verf.f32.pop %v177
    %v180 = vadd.f32 %v178, 1.0
    %v181 = vadd.f32 %v179, 1.0
    %v182 = vmul.f32 %v174, %v180
    %v183 = vmul.f32 %v175, %v181
    %v184 = vld [vmem:[#allocation2] sm:$0xff]
    %v185 = vld [vmem:[#allocation2 + $0x8] sm:$0xff]
    %v186 = vld [vmem:[#allocation2 + $0x10] sm:$0xff]
    %v187 = vld [vmem:[#allocation2 + $0x18] sm:$0xff]
    %v188 = vld [vmem:[#allocation5] sm:$0xff]
    %v189 = vld [vmem:[#allocation5 + $0x8] sm:$0xff]
    %v190 = vld [vmem:[#allocation5 + $0x10] sm:$0xff]
    %v191 = vld [vmem:[#allocation5 + $0x18] sm:$0xff]
    %v192 = vld [vmem:[#allocation5 + $0x20] sm:$0xff]
    %v193 = vld [vmem:[#allocation5 + $0x28] sm:$0xff]
    %v194 = vld [vmem:[#allocation5 + $0x30] sm:$0xff]
    %v195 = vld [vmem:[#allocation5 + $0x38] sm:$0xff]
    %v196 = vld [vmem:[#allocation5 + $0x40] sm:$0xff]
    %v197 = vld [vmem:[#allocation5 + $0x48] sm:$0xff]
    %v198 = vld [vmem:[#allocation5 + $0x50] sm:$0xff]
    %v199 = vld [vmem:[#allocation5 + $0x58] sm:$0xff]
    %v200 = vld [vmem:[#allocation5 + $0x60] sm:$0xff]
    %v201 = vld [vmem:[#allocation5 + $0x68] sm:$0xff]
    %v202 = vld [vmem:[#allocation5 + $0x70] sm:$0xff]
    %v203 = vld [vmem:[#allocation5 + $0x78] sm:$0xff]
    %v204 = vld [vmem:[#allocation5 + $0x80] sm:$0xff]
    %v205 = vld [vmem:[#allocation5 + $0x88] sm:$0xff]
    %v206 = vld [vmem:[#allocation5 + $0x90] sm:$0xff]
    %v207 = vld [vmem:[#allocation5 + $0x98] sm:$0xff]
    %v208 = vld [vmem:[#allocation5 + $0xa0] sm:$0xff]
    %v209 = vld [vmem:[#allocation5 + $0xa8] sm:$0xff]
    %v210 = vld [vmem:[#allocation5 + $0xb0] sm:$0xff]
    %v211 = vld [vmem:[#allocation5 + $0xb8] sm:$0xff]
    %v212 = vld [vmem:[#allocation5 + $0xc0] sm:$0xff]
    %v213 = vld [vmem:[#allocation5 + $0xc8] sm:$0xff]
    %v214 = vld [vmem:[#allocation5 + $0xd0] sm:$0xff]
    %v215 = vld [vmem:[#allocation5 + $0xd8] sm:$0xff]
    %v216 = vld [vmem:[#allocation5 + $0xe0] sm:$0xff]
    %v217 = vld [vmem:[#allocation5 + $0xe8] sm:$0xff]
    %v218 = vld [vmem:[#allocation5 + $0xf0] sm:$0xff]
    %v219 = vld [vmem:[#allocation5 + $0xf8] sm:$0xff]
    %220 = vmatprep.subr.mxu0 %v189
    %221 = vmatpush1.msra.mxu0 %v188
    %222 = vmatprep.subr.mxu0 %v191
    %223 = vmatpush1.msra.mxu0 %v190
    %224 = vmatprep.subr.mxu0 %v193
    %225 = vmatpush1.msra.mxu0 %v192
    %226 = vmatprep.subr.mxu0 %v195
    %227 = vmatpush1.msra.mxu0 %v194
    %228 = vmatprep.subr.mxu0 %v197
    %229 = vmatpush1.msra.mxu0 %v196
    %230 = vmatprep.subr.mxu0 %v199
    %231 = vmatpush1.msra.mxu0 %v198
    %232 = vmatprep.subr.mxu0 %v201
    %233 = vmatpush1.msra.mxu0 %v200
    %234 = vmatprep.subr.mxu0 %v203
    %235 = vmatpush1.msra.mxu0 %v202
    %236 = vmatprep.subr.mxu0 %v205
    %237 = vmatpush1.msra.mxu0 %v204
    %238 = vmatprep.subr.mxu0 %v207
    %239 = vmatpush1.msra.mxu0 %v206
    %240 = vmatprep.subr.mxu0 %v209
    %241 = vmatpush1.msra.mxu0 %v208
    %242 = vmatprep.subr.mxu0 %v211
    %243 = vmatpush1.msra.mxu0 %v210
    %244 = vmatprep.subr.mxu0 %v213
    %245 = vmatpush1.msra.mxu0 %v212
    %246 = vmatprep.subr.mxu0 %v215
    %247 = vmatpush1.msra.mxu0 %v214
    %248 = vmatprep.subr.mxu0 %v217
    %249 = vmatpush1.msra.mxu0 %v216
    %250 = vmatprep.subr.mxu0 %v219
    %251 = vmatpush1.msra.mxu0 %v218
    %252 = vmatprep.subr.mxu0 0.0
    %253 = vmatpush1.msra.mxu0 0.0
    %254 = vmatprep.subr.mxu0 0.0
    %255 = vmatpush1.msra.mxu0 0.0
    %256 = vmatprep.subr.mxu0 0.0
    %257 = vmatpush1.msra.mxu0 0.0
    %258 = vmatprep.subr.mxu0 0.0
    %259 = vmatpush1.msra.mxu0 0.0
    %260 = vmatprep.subr.mxu0 0.0
    %261 = vmatpush1.msra.mxu0 0.0
    %262 = vmatprep.subr.mxu0 0.0
    %263 = vmatpush1.msra.mxu0 0.0
    %264 = vmatprep.subr.mxu0 0.0
    %265 = vmatpush1.msra.mxu0 0.0
    %266 = vmatprep.subr.mxu0 0.0
    %267 = vmatpush1.msra.mxu0 0.0
    %268 = vmatprep.subr.mxu0 0.0
    %269 = vmatpush1.msra.mxu0 0.0
    %270 = vmatprep.subr.mxu0 0.0
    %271 = vmatpush1.msra.mxu0 0.0
    %272 = vmatprep.subr.mxu0 0.0
    %273 = vmatpush1.msra.mxu0 0.0
    %274 = vmatprep.subr.mxu0 0.0
    %275 = vmatpush1.msra.mxu0 0.0
    %276 = vmatprep.subr.mxu0 0.0
    %277 = vmatpush1.msra.mxu0 0.0
    %278 = vmatprep.subr.mxu0 0.0
    %279 = vmatpush1.msra.mxu0 0.0
    %280 = vmatprep.subr.mxu0 0.0
    %281 = vmatpush1.msra.mxu0 0.0
    %282 = vmatprep.subr.mxu0 0.0
    %283 = vmatpush1.msra.mxu0 0.0
    %284 = vmatprep.mubr.f32.mxu0 0.0
    %285 = vmatmul.mubr.f32.gmra.mrb[0].mxu0 %v182
    %v286 = vpop.f32.mrb[0].mxu0
    %v287 = vadd.f32 0.0, %v286
    %v288 = vpop.f32.mrb[0].mxu0
    %v289 = vadd.f32 0.0, %v288
    %290 = vmatprep.mubr.f32.mxu0 0.0
    %291 = vmatmul.mubr.f32.gmra.mrb[0].mxu0 %v183
    %v292 = vpop.f32.mrb[0].mxu0
    %v293 = vadd.f32 0.0, %v292
    %v294 = vpop.f32.mrb[0].mxu0
    %v295 = vadd.f32 0.0, %v294
    %296 = vdwg.mxu0
    %v297 = vadd.f32 %v184, %v287
    %v298 = vadd.f32 %v185, %v289
    %v299 = vadd.f32 %v186, %v293
    %v300 = vadd.f32 %v187, %v295
    %301 = vst [vmem:[#allocation2] sm:$0xff] %v297
    %302 = vst [vmem:[#allocation2 + $0x8] sm:$0xff] %v298
    %303 = vst [vmem:[#allocation2 + $0x10] sm:$0xff] %v299
    %304 = vst [vmem:[#allocation2 + $0x18] sm:$0xff] %v300
    // Predicated region
    $region34: #{mlp_forward.1} parent=1 // pred_check
      %p305 = pneg %p48
    $region35: #{mlp_forward.1} parent=1 // pred_check_branch
      %307 = sbr.rel (%p305) target = $region37
    $region36: #{mlp_forward.1} parent=1 // pred_region
      %v308 = vld [vmem:[#allocation2] sm:$0xff]
      %v309 = vld [vmem:[#allocation2 + $0x8] sm:$0xff]
      %v310 = vld [vmem:[#allocation2 + $0x10] sm:$0xff]
      %v311 = vld [vmem:[#allocation2 + $0x18] sm:$0xff]
      %v312 = vld [vmem:[%s4] sm:$0x3]
      %v314 = vlaneseq
      %v315 = vshrl.u32 %v314, 7
      %v316 = vsub.s32 0, %v315
      %v317 = vrot.slane %v312, %v316
      %v318 = vlaneseq
      %v319 = vshrl.u32 %v318, 7
      %v320 = vsub.s32 1, %v319
      %v321 = vrot.slane %v312, %v320
      %v324 = vadd.f32 %v308, %v317
      %v325 = vadd.f32 %v309, %v321
      %v326 = vadd.f32 %v310, %v317
      %v327 = vadd.f32 %v311, %v321
      %328 = vst [vmem:[%s5] sm:$0xff] %v324
      %329 = vst [vmem:[%s5 + $0x8] sm:$0xff] %v325
      %330 = vst [vmem:[%s5 + $0x10] sm:$0xff] %v326
      %331 = vst [vmem:[%s5 + $0x18] sm:$0xff] %v327
    $region37: #{mlp_forward.1} parent=1 // pred_fallthru
      _
    // Predicated region
    $region38: #{mlp_forward.1} parent=1 // pred_check
      _
    $region39: #{mlp_forward.1} parent=1 // pred_check_branch
      %333 = sbr.rel (0) target = $region41
    $region40: #{mlp_forward.1} parent=1 // pred_region
      _
    $region41: #{mlp_forward.1} parent=1 // pred_fallthru
      _
    // Predicated region
    $region42: #{mlp_forward.1} parent=1 // pred_check
      _
    $region43: #{mlp_forward.1} parent=1 // pred_check_branch
      %335 = sbr.rel (0) target = $region45
    $region44: #{mlp_forward.1} parent=1 // pred_region
      _
    $region45: #{mlp_forward.1} parent=1 // pred_fallthru
      _
    %336 = vsyncpa [#allocation4], 1
    %337 = vsyncpa [#allocation6], 1

</llo_original>
